<compile_context>
chip_gen: v7x
topology: tpu7x:2x2x1
jax: 0.10.0
libtpu: 0.0.40
codegen_flags: <defaults>
</compile_context>

<pallas_src>
import functools
import math

import jax
import jax.numpy as jnp
from jax import lax
from jax.experimental import pallas as pl
from jax.experimental.pallas import tpu as pltpu


# ----------------------------------------------------------------------------
# Generation-aware tile / VMEM budgets
# ----------------------------------------------------------------------------
_DEFAULT_VMEM = 64 << 20  # conservative fallback (v7x physical VMEM per TC)


def _vmem_capacity_bytes():
    try:
        info = pltpu.get_tpu_info()
    except Exception:
        return _DEFAULT_VMEM
    for attr in ("vmem_capacity_bytes", "vmem_size_bytes", "vmem_bytes"):
        v = getattr(info, attr, None)
        if isinstance(v, int) and v > 0:
            return v
    return _DEFAULT_VMEM


def _budgets(tile_bytes=None):
    """Per-input tile bytes (per pipeline buffer) and explicit vmem limit."""
    vmem = _vmem_capacity_bytes()
    if tile_bytes is None:
        tile_bytes = (4 << 20) if vmem <= (64 << 20) else (8 << 20)
    # 3 inputs x 2 pipeline buffers x tile, plus headroom for outputs/metadata,
    # capped well below physical VMEM.
    limit = min(6 * tile_bytes + (16 << 20), (vmem * 3) // 4)
    return tile_bytes, int(limit)


def _choose_tiles(n, d, itemsize, tile_bytes):
    """Pick a (TN, TD) block shape for an (n, d) array, ~tile_bytes/block."""
    sub = 16 if itemsize < 4 else 8           # bf16 packs 2 rows / sublane
    budget = max(tile_bytes // itemsize, 8 * 128)
    if n * d <= budget:
        return n, d                           # single block
    if d <= 128 or d * sub <= budget:
        # Whole rows fit: tile over rows only (contiguous HBM reads per block).
        tn = max((budget // d) // sub * sub, sub)
        return (n, d) if tn >= n else (tn, d)
    # Rows too large: a few sublane rows, tile along the lane (feature) axis.
    tn = n if n < sub else sub
    td = max((budget // tn) // 128 * 128, 128)
    return (tn, d) if td >= d else (tn, td)


# ----------------------------------------------------------------------------
# Kernel 1: generic per-row partial sums of squares of (a-p+eps), (a-n+eps).
#   Grid (row-tiles, col-tiles), both "parallel".  Each step writes a
#   (TR, 128) block: lane 0 = ap partial, lane 1 = an partial.
# ----------------------------------------------------------------------------
def _partial_sumsq_kernel(a_ref, p_ref, n_ref, o_ref, *, eps, cols, tile_cols,
                          mask_cols):
    a = a_ref[...].astype(jnp.float32)        # (TR, TC)
    p = p_ref[...].astype(jnp.float32)
    n = n_ref[...].astype(jnp.float32)

    dap = a - p + eps
    dan = a - n + eps
    if mask_cols:
        # Ragged last column tile: zero the tail BEFORE squaring so garbage
        # from the padded edge block cannot poison valid rows.
        j = pl.program_id(1)
        c_idx = j * tile_cols + lax.broadcasted_iota(jnp.int32, a.shape, 1)
        valid = c_idx < cols
        dap = jnp.where(valid, dap, 0.0)
        dan = jnp.where(valid, dan, 0.0)

    ss_ap = jnp.sum(dap * dap, axis=1, keepdims=True)   # (TR, 1)
    ss_an = jnp.sum(dan * dan, axis=1, keepdims=True)

    tr = a.shape[0]
    lane = lax.broadcasted_iota(jnp.int32, (tr, 128), 1)
    o_ref[...] = (jnp.where(lane == 0, ss_ap, 0.0)
                  + jnp.where(lane == 1, ss_an, 0.0))


def _pairwise_sumsq(a2, p2, n2, eps, tile_bytes=None):
    """Per-row sum((a-p+eps)^2), sum((a-n+eps)^2) over the last dim of (R,C)."""
    R, C = a2.shape
    itemsize = jnp.dtype(a2.dtype).itemsize
    tb, vmem_limit = _budgets(tile_bytes)
    TR, TC = _choose_tiles(R, C, itemsize, tb)
    nr = pl.cdiv(R, TR)
    nc = pl.cdiv(C, TC)
    mask_cols = (C % TC) != 0

    spec = pl.BlockSpec((TR, TC), lambda i, j: (i, j))
    out = pl.pallas_call(
        functools.partial(_partial_sumsq_kernel, eps=float(eps), cols=C,
                          tile_cols=TC, mask_cols=mask_cols),
        out_shape=jax.ShapeDtypeStruct((nc, nr * TR, 128), jnp.float32),
        grid_spec=pltpu.PrefetchScalarGridSpec(
            num_scalar_prefetch=0,
            grid=(nr, nc),
            in_specs=[spec, spec, spec],
            out_specs=pl.BlockSpec((None, TR, 128), lambda i, j: (j, i, 0)),
        ),
        compiler_params=pltpu.CompilerParams(
            dimension_semantics=("parallel", "parallel"),
            vmem_limit_bytes=vmem_limit),
    )(a2, p2, n2)

    ss = jnp.sum(out, axis=0)                 # (nr*TR, 128), tiny
    return ss[:R, 0], ss[:R, 1]


# ----------------------------------------------------------------------------
# Kernel 2: lane-dense packed TripletMarginLoss tile (W divides 128, R % G == 0)
#   Each 128-lane row holds G original rows of width W; per-row segmented sums
#   via one MXU matmul against a 0/1 selection matrix.  Per-tile partial sums
#   on a "parallel" grid.
# ----------------------------------------------------------------------------
def _margin_packed_kernel(a_ref, p_ref, n_ref, o_ref, *, margin, group, width,
                          n_packed_rows, tile_rows, mask_rows):
    t = pl.program_id(0)
    eps = 1e-6

    a = a_ref[...].astype(jnp.float32)        # (TRG, 128)
    p = p_ref[...].astype(jnp.float32)
    n = n_ref[...].astype(jnp.float32)
    dap = a - p + eps                         # PyTorch pairwise_distance eps
    dan = a - n + eps

    lanes = group * width                     # == 128
    lane_i = lax.broadcasted_iota(jnp.int32, (lanes, group), 0)
    grp_i = lax.broadcasted_iota(jnp.int32, (lanes, group), 1)
    sel = (lane_i // width == grp_i).astype(jnp.float32)

    sq_ap = jnp.dot(dap * dap, sel, preferred_element_type=jnp.float32,
                    precision=lax.Precision.HIGHEST)      # (TRG, G)
    sq_an = jnp.dot(dan * dan, sel, preferred_element_type=jnp.float32,
                    precision=lax.Precision.HIGHEST)
    hinge = jnp.maximum(jnp.sqrt(sq_ap) - jnp.sqrt(sq_an) + margin, 0.0)

    if mask_rows:
        # Ragged last row tile: select-out garbage packed rows (select, not
        # multiply, so NaN/Inf garbage cannot propagate).
        trg = hinge.shape[0]
        row_i = t * tile_rows + lax.broadcasted_iota(jnp.int32, (trg, group), 0)
        hinge = jnp.where(row_i < n_packed_rows, hinge, 0.0)

    partial = jnp.sum(hinge)
    r_i = lax.broadcasted_iota(jnp.int32, (8, 128), 0)
    c_i = lax.broadcasted_iota(jnp.int32, (8, 128), 1)
    o_ref[...] = jnp.where((r_i == 0) & (c_i == 0), partial, 0.0)


# ----------------------------------------------------------------------------
# Wrappers
# ----------------------------------------------------------------------------
def _soft_margin_loss(anchor, pos, neg, tile_bytes=None):
    N = anchor.shape[0]
    D = math.prod(anchor.shape[1:]) if anchor.ndim > 1 else 1
    a2 = anchor.reshape(N, D)                 # free row-major reshape
    p2 = pos.reshape(N, D)
    n2 = neg.reshape(N, D)
    ss_ap, ss_an = _pairwise_sumsq(a2, p2, n2, eps=0.0, tile_bytes=tile_bytes)
    x = jnp.sqrt(ss_an) - jnp.sqrt(ss_ap)
    # SoftMarginLoss with y=1: mean(log(1 + exp(-x))) in the stable form.
    return jnp.mean(jnp.maximum(-x, 0.0) + jnp.log1p(jnp.exp(-jnp.abs(x))))


def _margin_loss_packed(anchor, pos, neg, margin, tile_bytes=None):
    W = anchor.shape[-1]
    R = math.prod(anchor.shape[:-1]) if anchor.ndim > 1 else 1
    G = 128 // W
    RG = R // G                               # exact: R % G == 0 checked by caller
    a2 = anchor.reshape(RG, 128)              # free row-major reshape
    p2 = pos.reshape(RG, 128)
    n2 = neg.reshape(RG, 128)

    itemsize = jnp.dtype(a2.dtype).itemsize
    tb, vmem_limit = _budgets(tile_bytes)
    TRG, _ = _choose_tiles(RG, 128, itemsize, tb)
    num_tiles = pl.cdiv(RG, TRG)
    mask_rows = (RG % TRG) != 0

    spec = pl.BlockSpec((TRG, 128), lambda t: (t, 0))
    partials = pl.pallas_call(
        functools.partial(_margin_packed_kernel, margin=float(margin), group=G,
                          width=W, n_packed_rows=RG, tile_rows=TRG,
                          mask_rows=mask_rows),
        out_shape=jax.ShapeDtypeStruct((num_tiles * 8, 128), jnp.float32),
        grid_spec=pltpu.PrefetchScalarGridSpec(
            num_scalar_prefetch=0,
            grid=(num_tiles,),
            in_specs=[spec, spec, spec],
            out_specs=pl.BlockSpec((8, 128), lambda t: (t, 0)),
        ),
        compiler_params=pltpu.CompilerParams(
            dimension_semantics=("parallel",),
            vmem_limit_bytes=vmem_limit),
    )(a2, p2, n2)
    return jnp.sum(partials) * (1.0 / R)


def _margin_loss_general(anchor, pos, neg, margin, tile_bytes=None):
    W = anchor.shape[-1]
    R = math.prod(anchor.shape[:-1]) if anchor.ndim > 1 else 1
    a2 = anchor.reshape(R, W)
    p2 = pos.reshape(R, W)
    n2 = neg.reshape(R, W)
    ss_ap, ss_an = _pairwise_sumsq(a2, p2, n2, eps=1e-6, tile_bytes=tile_bytes)
    hinge = jnp.maximum(jnp.sqrt(ss_ap) - jnp.sqrt(ss_an) + margin, 0.0)
    return jnp.mean(hinge)


def _margin_loss(anchor, pos, neg, margin, tile_bytes=None):
    W = anchor.shape[-1]
    R = math.prod(anchor.shape[:-1]) if anchor.ndim > 1 else 1
    if W <= 128 and 128 % W == 0 and (128 // W) > 1 and R % (128 // W) == 0:
        return _margin_loss_packed(anchor, pos, neg, margin, tile_bytes)
    # TODO(synk): lcm-based lane packing when W does not divide 128 (or R is not
    # a multiple of the pack factor); the generic per-row path below is correct
    # but under-fills lanes for small W.
    return _margin_loss_general(anchor, pos, neg, margin, tile_bytes)


class TripletLoss:
    """Pallas/TPU port of model/loss.py::TripletLoss (forward only)."""

    def __init__(self, margin=None):
        self.margin = margin

    def __call__(self, anchor, pos, neg, tile_bytes=None):
        assert anchor.shape == pos.shape == neg.shape
        if self.margin is None:
            return _soft_margin_loss(anchor, pos, neg, tile_bytes=tile_bytes)
        return _margin_loss(anchor, pos, neg, float(self.margin),
                            tile_bytes=tile_bytes)


# ----------------------------------------------------------------------------
# Pure-JAX references for sanity checks.
# ----------------------------------------------------------------------------
def _ref_softmargin(a, p, n):
    ax = tuple(range(1, a.ndim))
    ap = jnp.sqrt(jnp.sum((a - p) ** 2, axis=ax))
    an = jnp.sqrt(jnp.sum((a - n) ** 2, axis=ax))
    x = an - ap
    return jnp.mean(jax.nn.softplus(-x))


def _ref_margin(a, p, n, margin):
    eps = 1e-6
    d_ap = jnp.sqrt(jnp.sum((a - p + eps) ** 2, axis=-1))
    d_an = jnp.sqrt(jnp.sum((a - n + eps) ** 2, axis=-1))
    return jnp.mean(jnp.maximum(d_ap - d_an + margin, 0.0))


if __name__ == "__main__":
    key = jax.random.PRNGKey(0)
    k1, k2, k3 = jax.random.split(key, 3)
    N, C, H, W = 2, 4, 16, 16
    anchor = jax.random.normal(k1, (N, C, H, W), dtype=jnp.float32)
    pos = jax.random.normal(k2, (N, C, H, W), dtype=jnp.float32)
    neg = jax.random.normal(k3, (N, C, H, W), dtype=jnp.float32)

    # Soft-margin path (margin=None).
    loss_soft = TripletLoss(margin=None)(anchor, pos, neg)
    jax.block_until_ready(loss_soft)
    assert jnp.allclose(loss_soft, _ref_softmargin(anchor, pos, neg),
                        rtol=1e-5, atol=1e-5)

    # Margin path (packed: W=16 divides 128).
    loss_margin = TripletLoss(margin=1.0)(anchor, pos, neg)
    jax.block_until_ready(loss_margin)
    assert jnp.allclose(loss_margin, _ref_margin(anchor, pos, neg, 1.0),
                        rtol=1e-3, atol=1e-3)

    # Margin path, generic fallback (W=48 does not divide 128).
    a48 = jax.random.normal(k1, (2, 5, 48), dtype=jnp.float32)
    p48 = jax.random.normal(k2, (2, 5, 48), dtype=jnp.float32)
    n48 = jax.random.normal(k3, (2, 5, 48), dtype=jnp.float32)
    lm48 = TripletLoss(margin=0.5)(a48, p48, n48)
    jax.block_until_ready(lm48)
    assert jnp.allclose(lm48, _ref_margin(a48, p48, n48, 0.5),
                        rtol=1e-4, atol=1e-4)

    # Ragged-tile coverage with a tiny tile-budget override (no wrapper pads):
    #   soft-margin with D=2400 -> masked column tail, multi-tile grid.
    a_r = jax.random.normal(k1, (4, 1, 8, 300), dtype=jnp.float32)
    p_r = jax.random.normal(k2, (4, 1, 8, 300), dtype=jnp.float32)
    n_r = jax.random.normal(k3, (4, 1, 8, 300), dtype=jnp.float32)
    loss_soft_r = TripletLoss(margin=None)(a_r, p_r, n_r, tile_bytes=4096)
    jax.block_until_ready(loss_soft_r)
    assert jnp.allclose(loss_soft_r, _ref_softmargin(a_r, p_r, n_r),
                        rtol=1e-5, atol=1e-5)

    #   packed margin with a ragged last row tile (RG=30, TRG=8).
    a_m = jax.random.normal(k1, (3, 20, 64), dtype=jnp.float32)
    p_m = jax.random.normal(k2, (3, 20, 64), dtype=jnp.float32)
    n_m = jax.random.normal(k3, (3, 20, 64), dtype=jnp.float32)
    loss_margin_r = TripletLoss(margin=1.0)(a_m, p_m, n_m, tile_bytes=4096)
    jax.block_until_ready(loss_margin_r)
    assert jnp.allclose(loss_margin_r, _ref_margin(a_m, p_m, n_m, 1.0),
                        rtol=1e-4, atol=1e-4)

    # bf16 inputs (halves HBM traffic; accumulation stays f32 in-kernel).
    a16, p16, n16 = (x.astype(jnp.bfloat16) for x in (anchor, pos, neg))
    af, pf, nf = (x.astype(jnp.float32) for x in (a16, p16, n16))
    loss_soft16 = TripletLoss(margin=None)(a16, p16, n16)
    loss_margin16 = TripletLoss(margin=1.0)(a16, p16, n16)
    jax.block_until_ready((loss_soft16, loss_margin16))
    assert jnp.allclose(loss_soft16, _ref_softmargin(af, pf, nf),
                        rtol=1e-2, atol=1e-2)
    assert jnp.allclose(loss_margin16, _ref_margin(af, pf, nf, 1.0),
                        rtol=1e-2, atol=1e-2)

    print("KERNEL_OK")
</pallas_src>

<mosaic_0001>
module attributes {stable_mosaic.version = 11 : i64} {
  func.func @_partial_sumsq_kernel(%arg0: i32, %arg1: i32, %arg2: memref<2x1024xf32, #tpu.memory_space<vmem>>, %arg3: memref<2x1024xf32, #tpu.memory_space<vmem>>, %arg4: memref<2x1024xf32, #tpu.memory_space<vmem>>, %arg5: memref<1x2x128xf32, #tpu.memory_space<vmem>>) attributes {dimension_semantics = [#tpu.dimension_semantics<parallel>, #tpu.dimension_semantics<parallel>], iteration_bounds = array<i64: 1, 1>, scalar_prefetch = 0 : i64, scratch_operands = 0 : i64, tpu.core_type = #tpu.core_type<tc>, window_params = [{transform_indices = @transform_0, window_bounds = array<i64: 2, 1024>}, {transform_indices = @transform_1, window_bounds = array<i64: 2, 1024>}, {transform_indices = @transform_2, window_bounds = array<i64: 2, 1024>}, {transform_indices = @transform_3, window_bounds = array<i64: 1, 2, 128>}]} {
    %c0 = arith.constant 0 : index
    %c0_0 = arith.constant 0 : index
    %0 = vector.load %arg2[%c0, %c0_0] : memref<2x1024xf32, #tpu.memory_space<vmem>>, vector<2x1024xf32>
    %c0_1 = arith.constant 0 : index
    %c0_2 = arith.constant 0 : index
    %1 = vector.load %arg3[%c0_1, %c0_2] : memref<2x1024xf32, #tpu.memory_space<vmem>>, vector<2x1024xf32>
    %c0_3 = arith.constant 0 : index
    %c0_4 = arith.constant 0 : index
    %2 = vector.load %arg4[%c0_3, %c0_4] : memref<2x1024xf32, #tpu.memory_space<vmem>>, vector<2x1024xf32>
    %3 = arith.subf %0, %1 : vector<2x1024xf32>
    %cst = arith.constant 0.000000e+00 : f32
    %4 = vector.broadcast %cst : f32 to vector<2x1024xf32>
    %5 = arith.addf %3, %4 : vector<2x1024xf32>
    %6 = arith.subf %0, %2 : vector<2x1024xf32>
    %cst_5 = arith.constant 0.000000e+00 : f32
    %7 = vector.broadcast %cst_5 : f32 to vector<2x1024xf32>
    %8 = arith.addf %6, %7 : vector<2x1024xf32>
    %9 = arith.mulf %5, %5 : vector<2x1024xf32>
    %cst_6 = arith.constant dense<0.000000e+00> : vector<2xf32>
    %10 = vector.multi_reduction <add>, %9, %cst_6 [1] : vector<2x1024xf32> to vector<2xf32>
    %11 = vector.shape_cast %10 : vector<2xf32> to vector<2x1xf32>
    %12 = arith.mulf %8, %8 : vector<2x1024xf32>
    %cst_7 = arith.constant dense<0.000000e+00> : vector<2xf32>
    %13 = vector.multi_reduction <add>, %12, %cst_7 [1] : vector<2x1024xf32> to vector<2xf32>
    %14 = vector.shape_cast %13 : vector<2xf32> to vector<2x1xf32>
    %15 = tpu.iota {dimensions = array<i32: 1>} : vector<2x128xi32>
    %c0_i32 = arith.constant 0 : i32
    %16 = vector.broadcast %c0_i32 : i32 to vector<2x128xi32>
    %17 = arith.cmpi eq, %15, %16 : vector<2x128xi32>
    %cst_8 = arith.constant 0.000000e+00 : f32
    %18 = vector.shape_cast %11 : vector<2x1xf32> to vector<2x1xf32>
    %19 = vector.broadcast %18 : vector<2x1xf32> to vector<2x128xf32>
    %20 = vector.broadcast %cst_8 : f32 to vector<2x128xf32>
    %21 = arith.select %17, %19, %20 : vector<2x128xi1>, vector<2x128xf32>
    %c1_i32 = arith.constant 1 : i32
    %22 = vector.broadcast %c1_i32 : i32 to vector<2x128xi32>
    %23 = arith.cmpi eq, %15, %22 : vector<2x128xi32>
    %cst_9 = arith.constant 0.000000e+00 : f32
    %24 = vector.shape_cast %14 : vector<2x1xf32> to vector<2x1xf32>
    %25 = vector.broadcast %24 : vector<2x1xf32> to vector<2x128xf32>
    %26 = vector.broadcast %cst_9 : f32 to vector<2x128xf32>
    %27 = arith.select %23, %25, %26 : vector<2x128xi1>, vector<2x128xf32>
    %28 = arith.addf %21, %27 : vector<2x128xf32>
    %c0_10 = arith.constant 0 : index
    %c0_11 = arith.constant 0 : index
    %c0_12 = arith.constant 0 : index
    %29 = vector.load %arg5[%c0_10, %c0_11, %c0_12] : memref<1x2x128xf32, #tpu.memory_space<vmem>>, vector<1x2x128xf32>
    %30 = vector.shape_cast %29 : vector<1x2x128xf32> to vector<2x128xf32>
    %31 = vector.shape_cast %28 : vector<2x128xf32> to vector<1x2x128xf32>
    tpu.vector_store %arg5[%c0_10, %c0_11, %c0_12], %31 {strides = array<i32>} : memref<1x2x128xf32, #tpu.memory_space<vmem>>, vector<1x2x128xf32>,
    return
  }
  func.func @transform_0(%arg0: i32, %arg1: i32) -> (i32, i32) {
    %c0_i32 = arith.constant 0 : i32
    return %arg0, %arg1 : i32, i32
  }
  func.func @transform_1(%arg0: i32, %arg1: i32) -> (i32, i32) {
    %c0_i32 = arith.constant 0 : i32
    return %arg0, %arg1 : i32, i32
  }
  func.func @transform_2(%arg0: i32, %arg1: i32) -> (i32, i32) {
    %c0_i32 = arith.constant 0 : i32
    return %arg0, %arg1 : i32, i32
  }
  func.func @transform_3(%arg0: i32, %arg1: i32) -> (i32, i32, i32) {
    %c0_i32 = arith.constant 0 : i32
    %c0_i32_0 = arith.constant 0 : i32
    return %arg1, %arg0, %c0_i32 : i32, i32, i32
  }
}

</mosaic_0001>

<llo_original>
// kernel: tpu_custom_call.1
$region0: #{tpu_custom_call.1}
  #allocation0 [shape = 'u32[]', space=smem, size = 0x4, offset = 0x4, fixed_abs, tag = 'smem constant byte address 0x4 - core index']
  #allocation1 [shape = 'u32[144,128]{1,0:T(1,128)}', space=vmem, size = 0x12000, scoped, tag = 'internal scratch']
  %s0 = inlined_call_operand.hbm [shape: f32[2,1024], index: 0, kind: input, shape index: {}]
  %s1 = inlined_call_operand.hbm [shape: f32[2,1024], index: 1, kind: input, shape index: {}]
  %s2 = inlined_call_operand.hbm [shape: f32[2,1024], index: 2, kind: input, shape index: {}]
  %s3 = inlined_call_operand.hbm [shape: f32[1,2,128], index: 3, kind: output, shape index: {}]
  %s4 = sld [smem:[#allocation0]]
  $region34: #{tpu_custom_call.1} parent=0
    _
  %s6 = ssub.s32 1, %s4
  %s7 = scalar_select 0, %s6, %s4
  $region1: #{tpu_custom_call.1} parent=0
    #allocation2 [shape = 'u8[8192]{0}', space=vmem, size = 0x2000, scoped, tag = 'input window, operand 0, single buffered']
    #allocation3 [shape = 's32[1]{0}', space=sflag, size = 0x4, scoped, tag = 'scoped memory for tpu_custom_call.1']
    #allocation4 [shape = 's32[1]{0}', space=sflag, size = 0x4, scoped, tag = 'scoped memory for tpu_custom_call.1']
    #allocation5 [shape = 'u8[8192]{0}', space=vmem, size = 0x2000, scoped, tag = 'input window, operand 1, single buffered']
    #allocation6 [shape = 's32[1]{0}', space=sflag, size = 0x4, scoped, tag = 'scoped memory for tpu_custom_call.1']
    #allocation7 [shape = 'u8[8192]{0}', space=vmem, size = 0x2000, scoped, tag = 'input window, operand 2, single buffered']
    #allocation8 [shape = 'u8[1024]{0}', space=vmem, size = 0x400, scoped, tag = 'output window, operand 0, single buffered']
    %8 = vsyncpa [#allocation3], 0
    %9 = vsyncpa [#allocation6], 0
    %10 = vsyncpa [#allocation4], 0
    // Predicated region
    $region2: #{tpu_custom_call.1} parent=1 // pred_check
      _
    $region3: #{tpu_custom_call.1} parent=1 // pred_check_branch
      %12 = sbr.rel (0) target = $region5
    $region4: #{tpu_custom_call.1} parent=1 // pred_region
      %s14 = ssub.s32 256, 256
      %15 = vsyncadd [#allocation3], %s14
      %s17 = sshll.u32 [#allocation2], 4
      %s18 = int_to_ptr.vmem [resolvable:$true] %s17
      %20 = dma.hbm_to_vmem [thread:$0]  %s0, 256, %s18, [#allocation3]
    $region5: #{tpu_custom_call.1} parent=1 // pred_fallthru
      _
    // Predicated region
    $region6: #{tpu_custom_call.1} parent=1 // pred_check
      _
    $region7: #{tpu_custom_call.1} parent=1 // pred_check_branch
      %22 = sbr.rel (0) target = $region9
    $region8: #{tpu_custom_call.1} parent=1 // pred_region
      %s24 = ssub.s32 256, 256
      %25 = vsyncadd [#allocation6], %s24
      %s27 = sshll.u32 [#allocation5], 4
      %s28 = int_to_ptr.vmem [resolvable:$true] %s27
      %30 = dma.hbm_to_vmem [thread:$0]  %s1, 256, %s28, [#allocation6]
    $region9: #{tpu_custom_call.1} parent=1 // pred_fallthru
      _
    // Predicated region
    $region10: #{tpu_custom_call.1} parent=1 // pred_check
      _
    $region11: #{tpu_custom_call.1} parent=1 // pred_check_branch
      %32 = sbr.rel (0) target = $region13
    $region12: #{tpu_custom_call.1} parent=1 // pred_region
      %s34 = ssub.s32 256, 256
      %35 = vsyncadd [#allocation6], %s34
      %s37 = sshll.u32 [#allocation7], 4
      %s38 = int_to_ptr.vmem [resolvable:$true] %s37
      %40 = dma.hbm_to_vmem [thread:$0]  %s2, 256, %s38, [#allocation6]
    $region13: #{tpu_custom_call.1} parent=1 // pred_fallthru
      _
    // Predicated region
    $region14: #{tpu_custom_call.1} parent=1 // pred_check
      _
    $region15: #{tpu_custom_call.1} parent=1 // pred_check_branch
      %42 = sbr.rel (0) target = $region17
    $region16: #{tpu_custom_call.1} parent=1 // pred_region
      %43 = dma.done [#allocation3], 256
    $region17: #{tpu_custom_call.1} parent=1 // pred_fallthru
      _
    // Predicated region
    $region18: #{tpu_custom_call.1} parent=1 // pred_check
      _
    $region19: #{tpu_custom_call.1} parent=1 // pred_check_branch
      %45 = sbr.rel (0) target = $region21
    $region20: #{tpu_custom_call.1} parent=1 // pred_region
      %46 = dma.done [#allocation6], 256
    $region21: #{tpu_custom_call.1} parent=1 // pred_fallthru
      _
    // Predicated region
    $region22: #{tpu_custom_call.1} parent=1 // pred_check
      _
    $region23: #{tpu_custom_call.1} parent=1 // pred_check_branch
      %48 = sbr.rel (0) target = $region25
    $region24: #{tpu_custom_call.1} parent=1 // pred_region
      %49 = dma.done [#allocation6], 256
    $region25: #{tpu_custom_call.1} parent=1 // pred_fallthru
      _
    %v50 = vld [vmem:[#allocation2] sm:$0xff]
    %v51 = vld [vmem:[#allocation2 + $0x8] sm:$0xff]
    %v52 = vld [vmem:[#allocation5] sm:$0xff]
    %v53 = vld [vmem:[#allocation5 + $0x8] sm:$0xff]
    %v54 = vld [vmem:[#allocation7] sm:$0xff]
    %v55 = vld [vmem:[#allocation7 + $0x8] sm:$0xff]
    %v56 = vsub.f32 %v50, %v52
    %v57 = vsub.f32 %v51, %v53
    %v58 = vadd.f32 %v56, 0.0
    %v59 = vadd.f32 %v57, 0.0
    %v60 = vsub.f32 %v50, %v54
    %v61 = vsub.f32 %v51, %v55
    %v62 = vadd.f32 %v60, 0.0
    %v63 = vadd.f32 %v61, 0.0
    %v64 = vmul.f32 %v58, %v58
    %v65 = vmul.f32 %v59, %v59
    %v68 = vcombine.high %v64, %v64
    %v70 = vunpack.c.l.s4 1983009808
    %v71 = vunpack.c.0.s8 %v70
    %v72 = vlaneseq
    %v73 = vshrl.u32 %v72, 7
    %v74 = vsub.s32 %v71, %v73
    %v75 = vrot.slane %v64, %v74
    %v77 = vunpack.c.l.s4 1983009808
    %v78 = vunpack.c.0.s8 %v77
    %v79 = vlaneseq
    %v80 = vshrl.u32 %v79, 7
    %v81 = vsub.s32 %v78, %v80
    %v82 = vrot.slane %v68, %v81
    %v83 = vcombine.high %v75, %v75
    %v84 = vcombine.high %v82, %v82
    %v85 = vcombine.high %v65, %v65
    %v87 = vunpack.c.l.s4 1983009808
    %v88 = vunpack.c.0.s8 %v87
    %v89 = vlaneseq
    %v90 = vshrl.u32 %v89, 7
    %v91 = vsub.s32 %v88, %v90
    %v92 = vrot.slane %v65, %v91
    %v94 = vunpack.c.l.s4 1983009808
    %v95 = vunpack.c.0.s8 %v94
    %v96 = vlaneseq
    %v97 = vshrl.u32 %v96, 7
    %v98 = vsub.s32 %v95, %v97
    %v99 = vrot.slane %v85, %v98
    %v100 = vcombine.high %v92, %v92
    %v101 = vcombine.high %v99, %v99
    %vm110 = vcmask 1041408
    %v111 = vsel %vm110, %v75, 0.0
    %v112 = vsel %vm110, %v83, 0.0
    %v113 = vadd.f32 %v111, %v112
    %v114 = vsel %vm110, %v82, 0.0
    %v115 = vadd.f32 %v113, %v114
    %v116 = vsel %vm110, %v84, 0.0
    %v117 = vadd.f32 %v115, %v116
    %v118 = vsel %vm110, %v92, 0.0
    %v119 = vadd.f32 %v117, %v118
    %v120 = vsel %vm110, %v100, 0.0
    %v121 = vadd.f32 %v119, %v120
    %v122 = vsel %vm110, %v99, 0.0
    %v123 = vadd.f32 %v121, %v122
    %v124 = vsel %vm110, %v101, 0.0
    %v125 = vadd.f32 %v123, %v124
    %126 = vadd.xlane.f32.xlu0 %v125
    %v127 = vpop.xlane.xlu0 %126
    %v128 = vmul.f32 %v62, %v62
    %v129 = vmul.f32 %v63, %v63
    %v132 = vcombine.high %v128, %v128
    %v134 = vunpack.c.l.s4 1983009808
    %v135 = vunpack.c.0.s8 %v134
    %v136 = vlaneseq
    %v137 = vshrl.u32 %v136, 7
    %v138 = vsub.s32 %v135, %v137
    %v139 = vrot.slane %v128, %v138
    %v141 = vunpack.c.l.s4 1983009808
    %v142 = vunpack.c.0.s8 %v141
    %v143 = vlaneseq
    %v144 = vshrl.u32 %v143, 7
    %v145 = vsub.s32 %v142, %v144
    %v146 = vrot.slane %v132, %v145
    %v147 = vcombine.high %v139, %v139
    %v148 = vcombine.high %v146, %v146
    %v149 = vcombine.high %v129, %v129
    %v151 = vunpack.c.l.s4 1983009808
    %v152 = vunpack.c.0.s8 %v151
    %v153 = vlaneseq
    %v154 = vshrl.u32 %v153, 7
    %v155 = vsub.s32 %v152, %v154
    %v156 = vrot.slane %v129, %v155
    %v158 = vunpack.c.l.s4 1983009808
    %v159 = vunpack.c.0.s8 %v158
    %v160 = vlaneseq
    %v161 = vshrl.u32 %v160, 7
    %v162 = vsub.s32 %v159, %v161
    %v163 = vrot.slane %v149, %v162
    %v164 = vcombine.high %v156, %v156
    %v165 = vcombine.high %v163, %v163
    %v174 = vsel %vm110, %v139, 0.0
    %v175 = vsel %vm110, %v147, 0.0
    %v176 = vadd.f32 %v174, %v175
    %v177 = vsel %vm110, %v146, 0.0
    %v178 = vadd.f32 %v176, %v177
    %v179 = vsel %vm110, %v148, 0.0
    %v180 = vadd.f32 %v178, %v179
    %v181 = vsel %vm110, %v156, 0.0
    %v182 = vadd.f32 %v180, %v181
    %v183 = vsel %vm110, %v164, 0.0
    %v184 = vadd.f32 %v182, %v183
    %v185 = vsel %vm110, %v163, 0.0
    %v186 = vadd.f32 %v184, %v185
    %v187 = vsel %vm110, %v165, 0.0
    %v188 = vadd.f32 %v186, %v187
    %189 = vadd.xlane.f32.xlu0 %v188
    %v190 = vpop.xlane.xlu0 %189
    %v191 = vlaneseq
    %v192 = vand.u32 %v191, 127
    %vm193 = vcmp.eq.s32.totalorder %v192, 0
    %v194 = vsel %vm193, %v127, 0.0
    %vm195 = vcmp.eq.s32.totalorder %v192, 1
    %v196 = vsel %vm195, %v190, 0.0
    %v197 = vadd.f32 %v194, %v196
    %198 = vst [vmem:[#allocation8] sm:$0x3] %v197
    // Predicated region
    $region26: #{tpu_custom_call.1} parent=1 // pred_check
      _
    $region27: #{tpu_custom_call.1} parent=1 // pred_check_branch
      %200 = sbr.rel (0) target = $region29
    $region28: #{tpu_custom_call.1} parent=1 // pred_region
      %s202 = ssub.s32 32, 32
      %203 = vsyncadd [#allocation4], %s202
      %s205 = sshll.u32 [#allocation8], 4
      %s206 = int_to_ptr.vmem [resolvable:$true] %s205
      %208 = dma.vmem_to_hbm [thread:$0]  %s206, 32, %s3, [#allocation4]
    $region29: #{tpu_custom_call.1} parent=1 // pred_fallthru
      _
    // Predicated region
    $region30: #{tpu_custom_call.1} parent=1 // pred_check
      _
    $region31: #{tpu_custom_call.1} parent=1 // pred_check_branch
      %210 = sbr.rel (0) target = $region33
    $region32: #{tpu_custom_call.1} parent=1 // pred_region
      %211 = dma.done [#allocation4], 32
    $region33: #{tpu_custom_call.1} parent=1 // pred_fallthru
      _
    %212 = vsyncpa [#allocation3], 1
    %213 = vsyncpa [#allocation6], 1
    %214 = vsyncpa [#allocation4], 1

</llo_original>
